<compile_context>
chip_gen: v7x
topology: tpu7x:2x2x1
jax: 0.10.0
libtpu: 0.0.40
codegen_flags: <defaults>
</compile_context>

<pallas_src>
import functools

import jax
import jax.numpy as jnp
from jax import lax
from jax.experimental import pallas as pl
from jax.experimental.pallas import tpu as pltpu

NEG_INF = -1e30  # finite "minus infinity" (avoids inf-inf NaNs in the online update)


def _round_up(x, m):
    return (x + m - 1) // m * m


def _device_budgets():
    """Return (tile working-set budget, vmem_limit_bytes) per TPU generation."""
    try:
        kind = jax.devices()[0].device_kind.lower()
    except Exception:
        kind = ""
    if "v7" in kind:                       # 64 MiB VMEM per TensorCore
        return 36 * 2**20, 48 * 2**20
    return 72 * 2**20, 96 * 2**20          # v5e / v6e: 128 MiB VMEM


def ce_lse_kernel(hidden_ref, embT_ref, lse_ref, m_sc, l_sc, *, n_pad):
    """One (tb, tv) logits tile: MXU matmul + online log-sum-exp across the V axis."""
    k = pl.program_id(1)
    nk = pl.num_programs(1)

    @pl.when(k == 0)
    def _init():
        m_sc[...] = jnp.full(m_sc.shape, NEG_INF, jnp.float32)
        l_sc[...] = jnp.zeros(l_sc.shape, jnp.float32)

    # bf16 operands straight to the MXU, f32 accumulation. embT tile is contract-major
    # (D, tv) so no per-tile transpose is needed.
    logits = jnp.dot(hidden_ref[...], embT_ref[...],
                     preferred_element_type=jnp.float32)           # (tb, tv) f32

    # Online (flash-style) log-sum-exp over the V tiles. No per-tile masking: padded
    # vocab columns (zero columns of embT) are corrected analytically at finalize.
    m_prev = m_sc[...]
    m_new = jnp.maximum(m_prev, jnp.max(logits, axis=-1, keepdims=True))
    alpha = jnp.exp(m_prev - m_new)
    p = jnp.exp(logits - m_new)
    l_sc[...] = alpha * l_sc[...] + jnp.sum(p, axis=-1, keepdims=True)
    m_sc[...] = m_new

    @pl.when(k == nk - 1)
    def _finalize():
        m = m_sc[...]
        l = l_sc[...]
        if n_pad:
            # Padded embT columns are exactly zero, so each contributed exp(0 - m)
            # to the running sum; remove that here ((tb, 1)-sized work only).
            l = jnp.maximum(l - n_pad * jnp.exp(-m), 1e-30)
        lse = m + jnp.log(l)                                        # (tb, 1)
        # Broadcast across 128 lanes so the store is a full-width (unmasked) vst.
        lse_ref[...] = jnp.broadcast_to(lse, lse_ref.shape)


def prepare_ce_table(emb, *, tv=512):
    """Pad + transpose the embedding table to contract-major (D, Vp) bf16.

    Build this ONCE and reuse it across training/eval steps; rebuilding it every
    forward costs an extra read+write+transpose of the whole table in HBM.
    """
    V, D = emb.shape
    Vp0 = _round_up(V, 128)
    tv = max(128, min(_round_up(tv, 128), Vp0))
    if tv >= 256:
        tv = _round_up(tv, 256)            # v6e/v7x MXU cadence (2 x 256 x 256)
    Vp = _round_up(V, tv)
    embT = jnp.zeros((D, Vp), jnp.bfloat16).at[:, :V].set(emb.astype(jnp.bfloat16).T)
    return {"embT": embT, "V": V, "Vp": Vp, "tv": tv, "D": D}


def cross_entropy_from_hidden(hidden, table, target_id, *, tb=256):
    """Fused LSE kernel + host-side target-logit subtraction and mean.

    hidden: (B, D) f32/bf16, table: prepare_ce_table() result, target_id: (B,) int.
    """
    B, D = hidden.shape
    assert D == table["D"]
    embT, V, Vp, tv = table["embT"], table["V"], table["Vp"], table["tv"]
    nv = Vp // tv

    budget, vmem_limit = _device_budgets()

    # ---- B tile sizing ------------------------------------------------------
    Bp0 = _round_up(B, 8)
    tb = max(8, min(_round_up(tb, 8), Bp0))
    if tb >= 256:
        tb = _round_up(tb, 256)            # MXU-friendly on v6e/v7x
    if tb >= Bp0 and Bp0 >= 16:
        # Keep at least 2 B tiles so the "parallel" axis shards across both cores.
        tb = _round_up(-(-Bp0 // 2), 8)

    def _footprint(t):
        bf16_tiles = 2 * 2 * (t * D + D * tv)      # hidden + embT, double-buffered
        f32_tmp = 3 * 4 * t * tv                   # logits / p temporaries
        out_tile = 2 * 4 * t * 128
        return bf16_tiles + f32_tmp + out_tile + 3 * 4 * t

    while tb > 8 and _footprint(tb) > budget:      # fit per-generation VMEM budget
        tb = max(8, _round_up(tb // 2, 8))

    Bp = _round_up(Bp0, tb)
    nb = Bp // tb

    hidden_bf = hidden.astype(jnp.bfloat16)
    hidden_b = jnp.zeros((Bp, D), jnp.bfloat16).at[:B].set(hidden_bf)

    kernel = functools.partial(ce_lse_kernel, n_pad=Vp - V)

    lse = pl.pallas_call(
        kernel,
        out_shape=jax.ShapeDtypeStruct((Bp, 128), jnp.float32),
        grid=(nb, nv),
        in_specs=[
            pl.BlockSpec((tb, D), lambda b, k: (b, 0)),   # hidden tile (per B tile)
            pl.BlockSpec((D, tv), lambda b, k: (0, k)),   # emb^T tile (streamed over V)
        ],
        out_specs=pl.BlockSpec((tb, 128), lambda b, k: (b, 0)),
        scratch_shapes=[
            pltpu.VMEM((tb, 1), jnp.float32),   # running max
            pltpu.VMEM((tb, 1), jnp.float32),   # running sum(exp)
        ],
        compiler_params=pltpu.CompilerParams(
            dimension_semantics=("parallel", "arbitrary"),
            vmem_limit_bytes=vmem_limit,
        ),
        cost_estimate=pl.CostEstimate(
            flops=2 * Bp * Vp * D,
            transcendentals=Bp * Vp,
            bytes_accessed=2 * D * Vp * nb + 2 * Bp * D + 4 * Bp * 128,
        ),
    )(hidden_b, embT)

    # Target logit: cheap (B, D) gather + row-dot done ONCE in plain JAX (same
    # bf16-rounded operands / f32 accumulation as the kernel's MXU matmul), instead
    # of a full-tile one-hot select inside every grid step.
    tgt_cols = jnp.take(embT, target_id.astype(jnp.int32), axis=1)       # (D, B) bf16
    tgt_logit = jnp.sum(hidden_bf.astype(jnp.float32) * tgt_cols.T.astype(jnp.float32),
                        axis=-1)                                          # (B,)

    # Drop padded batch rows; mean over the true batch (trivial work, outside kernel).
    return jnp.mean(lse[:B, 0] - tgt_logit)


def calculate_logits_hidden(emb, item_seq, item_seq_len,
                            time_seq, time_interval_seq, target_time):
    # TODO(synk): p_model.calculate_logits is an external model; synthesize a
    # deterministic masked mean-pool sequence encoder (glue, plain JAX) so the
    # Pallas CE hot path runs on realistic hidden states.
    B, L = item_seq.shape
    seq_emb = jnp.take(emb, item_seq, axis=0)                        # (B, L, D)
    pos = jnp.arange(L)[None, :]
    mask = (pos < item_seq_len[:, None]).astype(jnp.float32)         # (B, L)
    time_feat = 0.01 * (time_seq + time_interval_seq)                # (B, L)
    weighted = seq_emb * (mask * (1.0 + time_feat))[:, :, None]
    denom = jnp.maximum(item_seq_len[:, None].astype(jnp.float32), 1.0)
    hidden = weighted.sum(axis=1) / denom                            # (B, D)
    hidden = hidden + 0.001 * target_time[:, None]
    return hidden


def ce_forward(emb, item_seq, item_seq_len, target_id,
               time_seq, time_interval_seq, target_time, *, tb=256, tv=512):
    # NOTE: in a real training loop, call prepare_ce_table() once and reuse the
    # result across steps instead of rebuilding the padded/transposed table here.
    table = prepare_ce_table(emb, tv=tv)
    hidden = calculate_logits_hidden(emb, item_seq, item_seq_len,
                                     time_seq, time_interval_seq, target_time)
    return cross_entropy_from_hidden(hidden, table, target_id, tb=tb)


if __name__ == "__main__":
    # Small shapes chosen to exercise B tiling, V tiling and the padding correction:
    # B=12 -> padded to 16 (2 B tiles of 8, keeps the parallel axis 2-way);
    # V=1000 -> padded to 1024 (2 V tiles of 512, n_pad=24).
    B, L, D, V = 12, 10, 64, 1000

    key = jax.random.PRNGKey(0)
    k_emb, k_seq, k_len, k_tgt, k_t1, k_t2, k_t3 = jax.random.split(key, 7)

    emb = 0.02 * jax.random.normal(k_emb, (V, D), dtype=jnp.float32)
    item_seq = jax.random.randint(k_seq, (B, L), 0, V, dtype=jnp.int32)
    item_seq_len = jax.random.randint(k_len, (B,), 1, L + 1, dtype=jnp.int32)
    target_id = jax.random.randint(k_tgt, (B,), 0, V, dtype=jnp.int32)
    time_seq = jax.random.uniform(k_t1, (B, L), dtype=jnp.float32)
    time_interval_seq = jax.random.uniform(k_t2, (B, L), dtype=jnp.float32)
    target_time = jax.random.uniform(k_t3, (B,), dtype=jnp.float32)

    loss = ce_forward(emb, item_seq, item_seq_len, target_id,
                      time_seq, time_interval_seq, target_time)
    loss = jax.block_until_ready(loss)

    # Plain-JAX reference of the same semantics (bf16-rounded operands, f32 math).
    hidden = calculate_logits_hidden(emb, item_seq, item_seq_len,
                                     time_seq, time_interval_seq, target_time)
    h32 = hidden.astype(jnp.bfloat16).astype(jnp.float32)
    e32 = emb.astype(jnp.bfloat16).astype(jnp.float32)
    logits_ref = h32 @ e32.T
    lse = jax.nn.logsumexp(logits_ref, axis=-1)
    ref = jnp.mean(lse - logits_ref[jnp.arange(B), target_id])
    assert jnp.allclose(loss, ref, atol=1e-3, rtol=1e-3), (loss, ref)

    print("KERNEL_OK")
</pallas_src>

<mosaic_0001>
module attributes {stable_mosaic.version = 11 : i64} {
  func.func @ce_lse_kernel(%arg0: i32, %arg1: i32, %arg2: memref<8x64xbf16, #tpu.memory_space<vmem>>, %arg3: memref<64x512xbf16, #tpu.memory_space<vmem>>, %arg4: memref<8x128xf32, #tpu.memory_space<vmem>>, %arg5: memref<8x1xf32, #tpu.memory_space<vmem>>, %arg6: memref<8x1xf32, #tpu.memory_space<vmem>>) attributes {dimension_semantics = [#tpu.dimension_semantics<parallel>, #tpu.dimension_semantics<arbitrary>], iteration_bounds = array<i64: 2, 2>, scalar_prefetch = 0 : i64, scratch_operands = 2 : i64, tpu.core_type = #tpu.core_type<tc>, window_params = [{transform_indices = @transform_0, window_bounds = array<i64: 8, 64>}, {transform_indices = @transform_1, window_bounds = array<i64: 64, 512>}, {transform_indices = @transform_2, window_bounds = array<i64: 8, 128>}]} {
    %c0_i32 = arith.constant 0 : i32
    %0 = arith.cmpi eq, %arg1, %c0_i32 : i32
    %1 = arith.extui %0 : i1 to i32
    %c0_i32_0 = arith.constant 0 : i32
    %2 = arith.cmpi ne, %1, %c0_i32_0 : i32
    scf.if %2 {
      %cst_15 = arith.constant -1.000000e+30 : f32
      %25 = vector.broadcast %cst_15 : f32 to vector<8x1xf32>
      %c0_16 = arith.constant 0 : index
      %c0_17 = arith.constant 0 : index
      %26 = vector.load %arg5[%c0_16, %c0_17] : memref<8x1xf32, #tpu.memory_space<vmem>>, vector<8x1xf32>
      tpu.vector_store %arg5[%c0_16, %c0_17], %25 {strides = array<i32>} : memref<8x1xf32, #tpu.memory_space<vmem>>, vector<8x1xf32>,
      %cst_18 = arith.constant 0.000000e+00 : f32
      %27 = vector.broadcast %cst_18 : f32 to vector<8x1xf32>
      %c0_19 = arith.constant 0 : index
      %c0_20 = arith.constant 0 : index
      %28 = vector.load %arg6[%c0_19, %c0_20] : memref<8x1xf32, #tpu.memory_space<vmem>>, vector<8x1xf32>
      tpu.vector_store %arg6[%c0_19, %c0_20], %27 {strides = array<i32>} : memref<8x1xf32, #tpu.memory_space<vmem>>, vector<8x1xf32>,
    } else {
    }
    %c0 = arith.constant 0 : index
    %c0_1 = arith.constant 0 : index
    %3 = vector.load %arg2[%c0, %c0_1] : memref<8x64xbf16, #tpu.memory_space<vmem>>, vector<8x64xbf16>
    %c0_2 = arith.constant 0 : index
    %c0_3 = arith.constant 0 : index
    %4 = vector.load %arg3[%c0_2, %c0_3] : memref<64x512xbf16, #tpu.memory_space<vmem>>, vector<64x512xbf16>
    %cst = arith.constant dense<0.000000e+00> : vector<8x512xf32>
    %5 = tpu.matmul %3, %4, %cst {dimension_numbers = #tpu.dot_dimension_numbers<[1], [0], [0], [1], [0, 0, 1, 1], [], []>} : vector<8x64xbf16>, vector<64x512xbf16>, vector<8x512xf32> -> vector<8x512xf32>
    %c0_4 = arith.constant 0 : index
    %c0_5 = arith.constant 0 : index
    %6 = vector.load %arg5[%c0_4, %c0_5] : memref<8x1xf32, #tpu.memory_space<vmem>>, vector<8x1xf32>
    %cst_6 = arith.constant dense<0xFF800000> : vector<8xf32>
    %7 = vector.multi_reduction <maximumf>, %5, %cst_6 [1] : vector<8x512xf32> to vector<8xf32>
    %8 = vector.shape_cast %7 : vector<8xf32> to vector<8x1xf32>
    %9 = arith.maximumf %6, %8 : vector<8x1xf32>
    %10 = arith.subf %6, %9 : vector<8x1xf32>
    %11 = math.exp %10 : vector<8x1xf32>
    %12 = vector.broadcast %9 : vector<8x1xf32> to vector<8x512xf32>
    %13 = arith.subf %5, %12 : vector<8x512xf32>
    %14 = math.exp %13 : vector<8x512xf32>
    %c0_7 = arith.constant 0 : index
    %c0_8 = arith.constant 0 : index
    %15 = vector.load %arg6[%c0_7, %c0_8] : memref<8x1xf32, #tpu.memory_space<vmem>>, vector<8x1xf32>
    %16 = arith.mulf %11, %15 : vector<8x1xf32>
    %cst_9 = arith.constant dense<0.000000e+00> : vector<8xf32>
    %17 = vector.multi_reduction <add>, %14, %cst_9 [1] : vector<8x512xf32> to vector<8xf32>
    %18 = vector.shape_cast %17 : vector<8xf32> to vector<8x1xf32>
    %19 = arith.addf %16, %18 : vector<8x1xf32>
    %c0_10 = arith.constant 0 : index
    %c0_11 = arith.constant 0 : index
    %20 = vector.load %arg6[%c0_10, %c0_11] : memref<8x1xf32, #tpu.memory_space<vmem>>, vector<8x1xf32>
    tpu.vector_store %arg6[%c0_10, %c0_11], %19 {strides = array<i32>} : memref<8x1xf32, #tpu.memory_space<vmem>>, vector<8x1xf32>,
    %c0_12 = arith.constant 0 : index
    %c0_13 = arith.constant 0 : index
    %21 = vector.load %arg5[%c0_12, %c0_13] : memref<8x1xf32, #tpu.memory_space<vmem>>, vector<8x1xf32>
    tpu.vector_store %arg5[%c0_12, %c0_13], %9 {strides = array<i32>} : memref<8x1xf32, #tpu.memory_space<vmem>>, vector<8x1xf32>,
    %c1_i32 = arith.constant 1 : i32
    %22 = arith.cmpi eq, %arg1, %c1_i32 : i32
    %23 = arith.extui %22 : i1 to i32
    %c0_i32_14 = arith.constant 0 : i32
    %24 = arith.cmpi ne, %23, %c0_i32_14 : i32
    scf.if %24 {
      %c0_15 = arith.constant 0 : index
      %c0_16 = arith.constant 0 : index
      %25 = vector.load %arg5[%c0_15, %c0_16] : memref<8x1xf32, #tpu.memory_space<vmem>>, vector<8x1xf32>
      %c0_17 = arith.constant 0 : index
      %c0_18 = arith.constant 0 : index
      %26 = vector.load %arg6[%c0_17, %c0_18] : memref<8x1xf32, #tpu.memory_space<vmem>>, vector<8x1xf32>
      %cst_19 = arith.constant 0.000000e+00 : f32
      %27 = vector.broadcast %cst_19 : f32 to vector<8x1xf32>
      %28 = arith.subf %27, %25 : vector<8x1xf32>
      %29 = math.exp %28 : vector<8x1xf32>
      %cst_20 = arith.constant 2.400000e+01 : f32
      %30 = vector.broadcast %cst_20 : f32 to vector<8x1xf32>
      %31 = arith.mulf %30, %29 : vector<8x1xf32>
      %32 = arith.subf %26, %31 : vector<8x1xf32>
      %cst_21 = arith.constant 1.000000e-30 : f32
      %33 = vector.broadcast %cst_21 : f32 to vector<8x1xf32>
      %34 = arith.maximumf %32, %33 : vector<8x1xf32>
      %35 = math.log %34 : vector<8x1xf32>
      %36 = arith.addf %25, %35 : vector<8x1xf32>
      %37 = vector.shape_cast %36 : vector<8x1xf32> to vector<8x1xf32>
      %38 = vector.broadcast %37 : vector<8x1xf32> to vector<8x128xf32>
      %c0_22 = arith.constant 0 : index
      %c0_23 = arith.constant 0 : index
      %39 = vector.load %arg4[%c0_22, %c0_23] : memref<8x128xf32, #tpu.memory_space<vmem>>, vector<8x128xf32>
      tpu.vector_store %arg4[%c0_22, %c0_23], %38 {strides = array<i32>} : memref<8x128xf32, #tpu.memory_space<vmem>>, vector<8x128xf32>,
    } else {
    }
    return
  }
  func.func @transform_0(%arg0: i32, %arg1: i32) -> (i32, i32) {
    %c0_i32 = arith.constant 0 : i32
    %c0_i32_0 = arith.constant 0 : i32
    return %arg0, %c0_i32 : i32, i32
  }
  func.func @transform_1(%arg0: i32, %arg1: i32) -> (i32, i32) {
    %c0_i32 = arith.constant 0 : i32
    %c0_i32_0 = arith.constant 0 : i32
    return %c0_i32, %arg1 : i32, i32
  }
  func.func @transform_2(%arg0: i32, %arg1: i32) -> (i32, i32) {
    %c0_i32 = arith.constant 0 : i32
    %c0_i32_0 = arith.constant 0 : i32
    return %arg0, %c0_i32 : i32, i32
  }
}

</mosaic_0001>

<llo_original>
// kernel: tpu_custom_call.1
$region0: #{tpu_custom_call.1}
  #allocation0 [shape = 'u32[]', space=smem, size = 0x4, offset = 0x4, fixed_abs, tag = 'smem constant byte address 0x4 - core index']
  #allocation1 [shape = 'u32[144,128]{1,0:T(1,128)}', space=vmem, size = 0x12000, scoped, tag = 'internal scratch']
  #allocation2 [shape = 'f32[8,1]{1,0:T(8,128)}', space=vmem, size = 0x1000, scoped, tag = 'scratch operand']
  #allocation3 [shape = 'f32[8,1]{1,0:T(8,128)}', space=vmem, size = 0x1000, scoped, tag = 'scratch operand']
  %s0 = inlined_call_operand.hbm [shape: bf16[16,64], index: 0, kind: input, shape index: {}]
  %s1 = inlined_call_operand.hbm [shape: bf16[64,1024], index: 1, kind: input, shape index: {}]
  %s2 = inlined_call_operand.hbm [shape: f32[16,128], index: 2, kind: output, shape index: {}]
  %s3 = sld [smem:[#allocation0]]
  $region57: #{tpu_custom_call.1} parent=0
    _
  %s5 = ssub.s32 1, %s3
  %s6 = scalar_select 0, %s5, %s3
  $region1: #{tpu_custom_call.1} parent=0
    #allocation4 [shape = 'u8[4096]{0}', space=vmem, size = 0x1000, scoped, tag = 'input window, operand 0']
    #allocation5 [shape = 's32[2]{0}', space=sflag, size = 0x8, scoped, tag = 'scoped memory for tpu_custom_call.1']
    #allocation6 [shape = 's32[2]{0}', space=sflag, size = 0x8, scoped, tag = 'scoped memory for tpu_custom_call.1']
    #allocation7 [shape = 'u8[131072]{0}', space=vmem, size = 0x20000, scoped, tag = 'input window, operand 1']
    #allocation8 [shape = 's32[2]{0}', space=sflag, size = 0x8, scoped, tag = 'scoped memory for tpu_custom_call.1']
    #allocation9 [shape = 'u8[8192]{0}', space=vmem, size = 0x2000, scoped, tag = 'output window, operand 0']
    %7 = vsyncpa [#allocation5], 0
    %s8 = scalar_lea.sflag [#allocation5], 1
    %9 = vsyncpa %s8, 0
    %10 = vsyncpa [#allocation8], 0
    %s11 = scalar_lea.sflag [#allocation8], 1
    %12 = vsyncpa %s11, 0
    %13 = vsyncpa [#allocation6], 0
    %s14 = scalar_lea.sflag [#allocation6], 1
    %15 = vsyncpa %s14, 0
    loop: start=0, step=1, limit=6
    $region2: #{tpu_custom_call.1} parent=1 // loop_pre_header
      _
    $region3: #{tpu_custom_call.1} parent=1 // loop_header
      %s17 = sphi 0, %s21
      %p18 = scmp.ge.s32.totalorder %s17, 6
      %s24 = sphi 0, %s36
      %s25 = sphi 0, %s32
      %s26 = sphi 0, %s24
      %s27 = sphi 0, %s25
      %s28 = sphi 0, %s26
      %s29 = sphi 0, %s27
      %s39 = sphi 0, %s41
      %s42 = sphi 0, %s39
      %s43 = sphi 0, %s42
      %s59 = sphi 0, %s43
      %s65 = sphi 0, %s67
      %s68 = sphi 0, %s65
      %s69 = sphi 0, %s68
      %s85 = sphi 0, %s69
      %s91 = sphi 0, %s93
      %s94 = sphi 0, %s91
      %s95 = sphi 0, %s94
      %s111 = sphi 0, %s95
    $region4: #{tpu_custom_call.1} parent=1 // loop_header_branch
      %20 = sbr.rel (%p18) target = $region8
    $region5: #{tpu_custom_call.1} parent=1 // loop_body
      %s22 = ssub.s32 %s17, 1
      %s23 = ssub.s32 %s17, 2
      %s30 = sadd.s32 1, %s25
      %p31 = scmp.ge.s32.totalorder %s30, 2
      %s32 = scalar_select %p31, 0, %s30
      %s33 = sadd.s32 1, %s24
      %s34 = scalar_select %p31, %s33, %s24
      %p35 = scmp.ge.s32.totalorder %s34, 2
      %s36 = scalar_select %p35, 0, %s34
      %s37 = ssub.s32 %s24, %s36
      %p38 = scmp.eq.s32.totalorder %s37, 0
      %s40 = sadd.s32 %s39, 1
      %s41 = scalar_select %p38, %s39, %s40
      %p44 = pneg %p38
      %p45 = scmp.eq.s32.totalorder %s17, 3
      %p46 = por %p44, %p45
      %p47 = scmp.ne.s32.totalorder %s39, %s42
      %p48 = scmp.eq.s32.totalorder %s17, 0
      %p49 = por %p47, %p48
      %p50 = scmp.ne.s32.totalorder %s39, %s42
      %p51 = scmp.eq.s32.totalorder %s22, 3
      %p52 = por %p50, %p51
      %p53 = scmp.ne.s32.totalorder %s42, %s43
      %p54 = scmp.eq.s32.totalorder %s22, 0
      %p55 = por %p53, %p54
      %p56 = scmp.ne.s32.totalorder %s42, %s43
      %p57 = scmp.eq.s32.totalorder %s23, 3
      %p58 = por %p56, %p57
      %p60 = scmp.ne.s32.totalorder %s43, %s59
      %p61 = scmp.eq.s32.totalorder %s23, 0
      %p62 = por %p60, %p61
      %s63 = ssub.s32 %s25, %s32
      %p64 = scmp.eq.s32.totalorder %s63, 0
      %s66 = sadd.s32 %s65, 1
      %s67 = scalar_select %p64, %s65, %s66
      %p70 = pneg %p64
      %p71 = scmp.eq.s32.totalorder %s17, 3
      %p72 = por %p70, %p71
      %p73 = scmp.ne.s32.totalorder %s65, %s68
      %p74 = scmp.eq.s32.totalorder %s17, 0
      %p75 = por %p73, %p74
      %p76 = scmp.ne.s32.totalorder %s65, %s68
      %p77 = scmp.eq.s32.totalorder %s22, 3
      %p78 = por %p76, %p77
      %p79 = scmp.ne.s32.totalorder %s68, %s69
      %p80 = scmp.eq.s32.totalorder %s22, 0
      %p81 = por %p79, %p80
      %p82 = scmp.ne.s32.totalorder %s68, %s69
      %p83 = scmp.eq.s32.totalorder %s23, 3
      %p84 = por %p82, %p83
      %p86 = scmp.ne.s32.totalorder %s69, %s85
      %p87 = scmp.eq.s32.totalorder %s23, 0
      %p88 = por %p86, %p87
      %s89 = ssub.s32 %s24, %s36
      %p90 = scmp.eq.s32.totalorder %s89, 0
      %s92 = sadd.s32 %s91, 1
      %s93 = scalar_select %p90, %s91, %s92
      %p96 = pneg %p90
      %p97 = scmp.eq.s32.totalorder %s17, 3
      %p98 = por %p96, %p97
      %p99 = scmp.ne.s32.totalorder %s91, %s94
      %p100 = scmp.eq.s32.totalorder %s17, 0
      %p101 = por %p99, %p100
      %p102 = scmp.ne.s32.totalorder %s91, %s94
      %p103 = scmp.eq.s32.totalorder %s22, 3
      %p104 = por %p102, %p103
      %p105 = scmp.ne.s32.totalorder %s94, %s95
      %p106 = scmp.eq.s32.totalorder %s22, 0
      %p107 = por %p105, %p106
      %p108 = scmp.ne.s32.totalorder %s94, %s95
      %p109 = scmp.eq.s32.totalorder %s23, 3
      %p110 = por %p108, %p109
      %p112 = scmp.ne.s32.totalorder %s95, %s111
      %p113 = scmp.eq.s32.totalorder %s23, 0
      %p114 = por %p112, %p113
      %p115 = scmp.le.s32.totalorder 1, %s17
      %p116 = scmp.lt.s32.totalorder %s17, 5
      %p117 = pnand %p115, %p116
      %p118 = pneg %p117
      // Predicated region
      $region9: #{tpu_custom_call.1} parent=5 // pred_check
        _
      $region10: #{tpu_custom_call.1} parent=5 // pred_check_branch
        %120 = sbr.rel (%p117) target = $region12
      $region11: #{tpu_custom_call.1} parent=5 // pred_region
        %s121 = ssub.s32 %s17, 1
      $region12: #{tpu_custom_call.1} parent=5 // pred_fallthru
        _
      %p122 = scmp.lt.s32.totalorder %s17, 4
      // Predicated region
      $region13: #{tpu_custom_call.1} parent=5 // pred_check
        %p123 = pneg %p122
      $region14: #{tpu_custom_call.1} parent=5 // pred_check_branch
        %125 = sbr.rel (%p123) target = $region16
      $region15: #{tpu_custom_call.1} parent=5 // pred_region
        // Predicated region
        $region17: #{tpu_custom_call.1} parent=15 // pred_check
          %p126 = pneg %p49
        $region18: #{tpu_custom_call.1} parent=15 // pred_check_branch
          %128 = sbr.rel (%p126) target = $region20
        $region19: #{tpu_custom_call.1} parent=15 // pred_region
          %s129 = sand.u32 %s39, 1
          %s130 = scalar_lea.sflag [#allocation5], %s129
          %s131 = sand.u32 %s39, 1
          %s132 = smul.addr %s131, 4
          %s133 = scalar_lea.vmem [#allocation4], %s132
          %s135 = ssub.s32 64, 64
          %136 = vsyncadd %s130, %s135
          %s137 = smul.addr %s24, 64
          %s138 = scalar_lea.hbm %s0, %s137
          %s140 = sshll.u32 %s133, 4
          %s141 = int_to_ptr.vmem [resolvable:$true] %s140
          %143 = dma.hbm_to_vmem [thread:$0]  %s138, 64, %s141, %s130
        $region20: #{tpu_custom_call.1} parent=15 // pred_fallthru
          _
        // Predicated region
        $region21: #{tpu_custom_call.1} parent=15 // pred_check
          %p144 = pneg %p75
        $region22: #{tpu_custom_call.1} parent=15 // pred_check_branch
          %146 = sbr.rel (%p144) target = $region24
        $region23: #{tpu_custom_call.1} parent=15 // pred_region
          %s147 = sand.u32 %s65, 1
          %s148 = scalar_lea.sflag [#allocation8], %s147
          %s149 = sand.u32 %s65, 1
          %s150 = smul.addr %s149, 128
          %s151 = scalar_lea.vmem [#allocation7], %s150
          %s152 = smul.u32 4, %s25
          %s154 = ssub.s32 2048, 2048
          %155 = vsyncadd %s148, %s154
          %s156 = smul.addr %s152, 64
          %s157 = scalar_lea.hbm %s1, %s156
          %s158 = sshll.u32 %s151, 4
          %s159 = int_to_ptr.vmem [resolvable:$true] %s158
          %164 = dma.hbm_to_vmem [thread:$0]  %s157, 2048, %s159, %s148, 512, 256, 16
        $region24: #{tpu_custom_call.1} parent=15 // pred_fallthru
          _
      $region16: #{tpu_custom_call.1} parent=5 // pred_fallthru
        _
      %p165 = scmp.le.s32.totalorder 1, %s17
      %p166 = scmp.lt.s32.totalorder %s17, 5
      %p167 = pnand %p165, %p166
      %p168 = pneg %p167
      // Predicated region
      $region25: #{tpu_custom_call.1} parent=5 // pred_check
        _
      $region26: #{tpu_custom_call.1} parent=5 // pred_check_branch
        %170 = sbr.rel (%p167) target = $region28
      $region27: #{tpu_custom_call.1} parent=5 // pred_region
        %s171 = ssub.s32 %s17, 1
        %s172 = sand.u32 %s42, 1
        %s173 = scalar_lea.sflag [#allocation5], %s172
        %s174 = sand.u32 %s42, 1
        %s175 = smul.addr %s174, 4
        %s176 = scalar_lea.vmem [#allocation4], %s175
        // Predicated region
        $region29: #{tpu_custom_call.1} parent=27 // pred_check
          %p177 = pneg %p55
        $region30: #{tpu_custom_call.1} parent=27 // pred_check_branch
          %179 = sbr.rel (%p177) target = $region32
        $region31: #{tpu_custom_call.1} parent=27 // pred_region
          %180 = dma.done %s173, 64
        $region32: #{tpu_custom_call.1} parent=27 // pred_fallthru
          _
        %s181 = sand.u32 %s68, 1
        %s182 = scalar_lea.sflag [#allocation8], %s181
        %s183 = sand.u32 %s68, 1
        %s184 = smul.addr %s183, 128
        %s185 = scalar_lea.vmem [#allocation7], %s184
        // Predicated region
        $region33: #{tpu_custom_call.1} parent=27 // pred_check
          %p186 = pneg %p81
        $region34: #{tpu_custom_call.1} parent=27 // pred_check_branch
          %188 = sbr.rel (%p186) target = $region36
        $region35: #{tpu_custom_call.1} parent=27 // pred_region
          %189 = dma.done %s182, 2048
        $region36: #{tpu_custom_call.1} parent=27 // pred_fallthru
          _
        %s190 = sand.u32 %s42, 1
        %s191 = scalar_lea.sflag [#allocation5], %s190
        %s192 = sand.u32 %s42, 1
        %s193 = smul.addr %s192, 4
        %s194 = scalar_lea.vmem [#allocation4], %s193
        %p195 = pneg %p55
        %p196 = pneg %p52
        %s197 = sand.u32 %s68, 1
        %s198 = scalar_lea.sflag [#allocation8], %s197
        %s199 = sand.u32 %s68, 1
        %s200 = smul.addr %s199, 128
        %s201 = scalar_lea.vmem [#allocation7], %s200
        %p202 = pneg %p81
        %p203 = pneg %p78
        %p204 = pneg %p107
        %p205 = pneg %p104
        %s206 = sand.u32 %s94, 1
        %s207 = scalar_lea.sflag [#allocation6], %s206
        %s208 = sand.u32 %s94, 1
        %s209 = smul.addr %s208, 8
        %s210 = scalar_lea.vmem [#allocation9], %s209
        %s211 = smul.u32 4, %s27
        %p213 = scmp.eq.s32.totalorder %s27, 0
        // Predicated region
        $region37: #{tpu_custom_call.1} parent=27 // pred_check
          %p214 = pneg %p213
        $region38: #{tpu_custom_call.1} parent=27 // pred_check_branch
          %216 = sbr.rel (%p214) target = $region40
        $region39: #{tpu_custom_call.1} parent=27 // pred_region
          %vm217 = vcmask 7168
          %218 = vst.msk [vmem:[#allocation2] sm:$0xff] %vm217, -1e+30
          %219 = vst.msk [vmem:[#allocation3] sm:$0xff] %vm217, 0.0
        $region40: #{tpu_custom_call.1} parent=27 // pred_fallthru
          _
        %v220 = vld [vmem:[%s176] sm:$0xf]
        %v221 = vld [vmem:[%s185] sm:$0xff]
        %v222 = vld [vmem:[%s185 + $0x8] sm:$0xff]
        %v223 = vld [vmem:[%s185 + $0x10] sm:$0xff]
        %v224 = vld [vmem:[%s185 + $0x18] sm:$0xff]
        %v225 = vld [vmem:[%s185 + $0x20] sm:$0xff]
        %v226 = vld [vmem:[%s185 + $0x28] sm:$0xff]
        %v227 = vld [vmem:[%s185 + $0x30] sm:$0xff]
        %v228 = vld [vmem:[%s185 + $0x38] sm:$0xff]
        %v229 = vld [vmem:[%s185 + $0x40] sm:$0xff]
        %v230 = vld [vmem:[%s185 + $0x48] sm:$0xff]
        %v231 = vld [vmem:[%s185 + $0x50] sm:$0xff]
        %v232 = vld [vmem:[%s185 + $0x58] sm:$0xff]
        %v233 = vld [vmem:[%s185 + $0x60] sm:$0xff]
        %v234 = vld [vmem:[%s185 + $0x68] sm:$0xff]
        %v235 = vld [vmem:[%s185 + $0x70] sm:$0xff]
        %v236 = vld [vmem:[%s185 + $0x78] sm:$0xff]
        %v253 = vunpack.c.l.b16 %v221
        %v254 = vunpack.c.h.b16 %v221
        %v255 = vunpack.c.l.b16 %v222
        %v256 = vunpack.c.h.b16 %v222
        %v257 = vunpack.c.l.b16 %v223
        %v258 = vunpack.c.h.b16 %v223
        %v259 = vunpack.c.l.b16 %v224
        %v260 = vunpack.c.h.b16 %v224
        %v261 = vunpack.c.l.b16 %v225
        %v262 = vunpack.c.h.b16 %v225
        %v263 = vunpack.c.l.b16 %v226
        %v264 = vunpack.c.h.b16 %v226
        %v265 = vunpack.c.l.b16 %v227
        %v266 = vunpack.c.h.b16 %v227
        %v267 = vunpack.c.l.b16 %v228
        %v268 = vunpack.c.h.b16 %v228
        %v269 = vunpack.c.l.b16 %v229
        %v270 = vunpack.c.h.b16 %v229
        %v271 = vunpack.c.l.b16 %v230
        %v272 = vunpack.c.h.b16 %v230
        %v273 = vunpack.c.l.b16 %v231
        %v274 = vunpack.c.h.b16 %v231
        %v275 = vunpack.c.l.b16 %v232
        %v276 = vunpack.c.h.b16 %v232
        %v277 = vunpack.c.l.b16 %v233
        %v278 = vunpack.c.h.b16 %v233
        %v279 = vunpack.c.l.b16 %v234
        %v280 = vunpack.c.h.b16 %v234
        %v281 = vunpack.c.l.b16 %v235
        %v282 = vunpack.c.h.b16 %v235
        %v283 = vunpack.c.l.b16 %v236
        %v284 = vunpack.c.h.b16 %v236
        %v285 = vpack.c.b16 %v257, %v253
        %v286 = vpack.c.b16 %v258, %v254
        %v287 = vpack.c.b16 %v259, %v255
        %v288 = vpack.c.b16 %v260, %v256
        %v289 = vpack.c.b16 %v265, %v261
        %v290 = vpack.c.b16 %v266, %v262
        %v291 = vpack.c.b16 %v267, %v263
        %v292 = vpack.c.b16 %v268, %v264
        %v293 = vpack.c.b16 %v273, %v269
        %v294 = vpack.c.b16 %v274, %v270
        %v295 = vpack.c.b16 %v275, %v271
        %v296 = vpack.c.b16 %v276, %v272
        %v297 = vpack.c.b16 %v281, %v277
        %v298 = vpack.c.b16 %v282, %v278
        %v299 = vpack.c.b16 %v283, %v279
        %v300 = vpack.c.b16 %v284, %v280
        %vm317 = vcmask 523264
        %v319 = vsel %vm317, %v220, 0
        %321 = vmatprep.subr.bf16.mxu0 %v286
        %322 = vmatpush1.bf16.msra.mxu0 %v285
        %323 = vmatprep.subr.bf16.mxu0 %v290
        %324 = vmatpush1.bf16.msra.mxu0 %v289
        %325 = vmatprep.subr.bf16.mxu0 %v294
        %326 = vmatpush1.bf16.msra.mxu0 %v293
        %327 = vmatprep.subr.bf16.mxu0 %v298
        %328 = vmatpush1.bf16.msra.mxu0 %v297
        %329 = vmatprep.subr.bf16.mxu0 0
        %330 = vmatpush1.bf16.msra.mxu0 0
        %331 = vmatprep.subr.bf16.mxu0 0
        %332 = vmatpush1.bf16.msra.mxu0 0
        %333 = vmatprep.subr.bf16.mxu0 0
        %334 = vmatpush1.bf16.msra.mxu0 0
        %335 = vmatprep.subr.bf16.mxu0 0
        %336 = vmatpush1.bf16.msra.mxu0 0
        %337 = vmatprep.subr.bf16.mxu0 0
        %338 = vmatpush1.bf16.msra.mxu0 0
        %339 = vmatprep.subr.bf16.mxu0 0
        %340 = vmatpush1.bf16.msra.mxu0 0
        %341 = vmatprep.subr.bf16.mxu0 0
        %342 = vmatpush1.bf16.msra.mxu0 0
        %343 = vmatprep.subr.bf16.mxu0 0
        %344 = vmatpush1.bf16.msra.mxu0 0
        %345 = vmatprep.subr.bf16.mxu0 0
        %346 = vmatpush1.bf16.msra.mxu0 0
        %347 = vmatprep.subr.bf16.mxu0 0
        %348 = vmatpush1.bf16.msra.mxu0 0
        %349 = vmatprep.subr.bf16.mxu0 0
        %350 = vmatpush1.bf16.msra.mxu0 0
        %351 = vmatprep.subr.bf16.mxu0 0
        %352 = vmatpush1.bf16.msra.mxu0 0
        %353 = vmatprep.mubr.bf16.mxu0 0
        %354 = vmatmul.mubr.bf16.gmra.mrb[0].mxu0 %v319
        %v355 = vpop.f32.mrb[0].mxu0
        %v356 = vadd.f32 0.0, %v355
        %v357 = vpop.f32.mrb[0].mxu0
        %v358 = vadd.f32 0.0, %v357
        %v359 = vpop.f32.mrb[0].mxu0
        %v360 = vpop.f32.mrb[0].mxu0
        %361 = vdwg.mxu0
        %362 = vmatprep.subr.bf16.mxu0 %v288
        %363 = vmatpush1.bf16.msra.mxu0 %v287
        %364 = vmatprep.subr.bf16.mxu0 %v292
        %365 = vmatpush1.bf16.msra.mxu0 %v291
        %366 = vmatprep.subr.bf16.mxu0 %v296
        %367 = vmatpush1.bf16.msra.mxu0 %v295
        %368 = vmatprep.subr.bf16.mxu0 %v300
        %369 = vmatpush1.bf16.msra.mxu0 %v299
        %370 = vmatprep.subr.bf16.mxu0 0
        %371 = vmatpush1.bf16.msra.mxu0 0
        %372 = vmatprep.subr.bf16.mxu0 0
        %373 = vmatpush1.bf16.msra.mxu0 0
        %374 = vmatprep.subr.bf16.mxu0 0
        %375 = vmatpush1.bf16.msra.mxu0 0
        %376 = vmatprep.subr.bf16.mxu0 0
        %377 = vmatpush1.bf16.msra.mxu0 0
        %378 = vmatprep.subr.bf16.mxu0 0
        %379 = vmatpush1.bf16.msra.mxu0 0
        %380 = vmatprep.subr.bf16.mxu0 0
        %381 = vmatpush1.bf16.msra.mxu0 0
        %382 = vmatprep.subr.bf16.mxu0 0
        %383 = vmatpush1.bf16.msra.mxu0 0
        %384 = vmatprep.subr.bf16.mxu0 0
        %385 = vmatpush1.bf16.msra.mxu0 0
        %386 = vmatprep.subr.bf16.mxu0 0
        %387 = vmatpush1.bf16.msra.mxu0 0
        %388 = vmatprep.subr.bf16.mxu0 0
        %389 = vmatpush1.bf16.msra.mxu0 0
        %390 = vmatprep.subr.bf16.mxu0 0
        %391 = vmatpush1.bf16.msra.mxu0 0
        %392 = vmatprep.subr.bf16.mxu0 0
        %393 = vmatpush1.bf16.msra.mxu0 0
        %394 = vmatprep.mubr.bf16.mxu0 0
        %395 = vmatmul.mubr.bf16.gmra.mrb[0].mxu0 %v319
        %v396 = vpop.f32.mrb[0].mxu0
        %v397 = vadd.f32 0.0, %v396
        %v398 = vpop.f32.mrb[0].mxu0
        %v399 = vadd.f32 0.0, %v398
        %v400 = vpop.f32.mrb[0].mxu0
        %v401 = vpop.f32.mrb[0].mxu0
        %402 = vdwg.mxu0
        %v403 = vld [vmem:[#allocation2] sm:$0xff]
        %v404 = vmax.f32 %v356, %v358
        %v405 = vmax.f32 %v397, %v399
        %v406 = vmax.f32 %v404, %v405
        %407 = vmax.xlane.f32.xlu0 %v406
        %v408 = vpop.xlane.xlu0 %407
        %v409 = vmax.f32 %v403, %v408
        %v410 = vsub.f32 %v403, %v409
        %v411 = vmul.f32 %v410, 1.442695
        %v412 = vpow.pop %v411
        %414 = vset.pattern.permute.xlu0 0
        %415 = vperm.xlu0 %414, %v409
        %v416 = vpop.permute.xlu0 %415
        %v418 = vsub.f32 %v356, %v416
        %v419 = vsub.f32 %v358, %v416
        %v420 = vsub.f32 %v397, %v416
        %v421 = vsub.f32 %v399, %v416
        %v422 = vmul.f32 %v418, 1.442695
        %v423 = vpow.pop %v422
        %v424 = vmul.f32 %v419, 1.442695
        %v425 = vpow.pop %v424
        %v426 = vmul.f32 %v420, 1.442695
        %v427 = vpow.pop %v426
        %v428 = vmul.f32 %v421, 1.442695
        %v429 = vpow.pop %v428
        %v430 = vld [vmem:[#allocation3] sm:$0xff]
        %v431 = vmul.f32 %v412, %v430
        %v432 = vadd.f32 %v423, %v425
        %v433 = vadd.f32 %v432, %v427
        %v434 = vadd.f32 %v433, %v429
        %435 = vadd.xlane.f32.xlu0 %v434
        %v436 = vpop.xlane.xlu0 %435
        %v437 = vadd.f32 %v431, %v436
        %vm438 = vcmask 7168
        %439 = vst.msk [vmem:[#allocation3] sm:$0xff] %vm438, %v437
        %440 = vst.msk [vmem:[#allocation2] sm:$0xff] %vm438, %v409
        %p441 = scmp.eq.s32.totalorder %s27, 1
        // Predicated region
        $region41: #{tpu_custom_call.1} parent=27 // pred_check
          %p442 = pneg %p441
        $region42: #{tpu_custom_call.1} parent=27 // pred_check_branch
          %444 = sbr.rel (%p442) target = $region44
        $region43: #{tpu_custom_call.1} parent=27 // pred_region
          %v445 = vld [vmem:[#allocation2] sm:$0xff]
          %v446 = vld [vmem:[#allocation3] sm:$0xff]
          %v447 = vsub.f32 0.0, %v445
          %v448 = vmul.f32 %v447, 1.442695
          %v449 = vpow.pop %v448
          %v450 = vmul.f32 %v449, 24.0
          %v451 = vsub.f32 %v446, %v450
          %v452 = vmax.f32 %v451, 1e-30
          %v453 = vlog2.pop %v452
          %v454 = vmul.f32 %v453, 0.6931472
          %v455 = vadd.f32 %v445, %v454
          %457 = vset.pattern.permute.xlu0 0
          %458 = vperm.xlu0 %457, %v455
          %v459 = vpop.permute.xlu0 %458
          %461 = vst [vmem:[%s210] sm:$0xff] %v459
        $region44: #{tpu_custom_call.1} parent=27 // pred_fallthru
          _
        %s462 = sand.u32 %s94, 1
        %s463 = scalar_lea.sflag [#allocation6], %s462
        %s464 = sand.u32 %s94, 1
        %s465 = smul.addr %s464, 8
        %s466 = scalar_lea.vmem [#allocation9], %s465
        // Predicated region
        $region45: #{tpu_custom_call.1} parent=27 // pred_check
          %p467 = pneg %p104
        $region46: #{tpu_custom_call.1} parent=27 // pred_check_branch
          %469 = sbr.rel (%p467) target = $region48
        $region47: #{tpu_custom_call.1} parent=27 // pred_region
          %s471 = ssub.s32 128, 128
          %472 = vsyncadd %s463, %s471
          %s473 = smul.addr %s26, 128
          %s474 = scalar_lea.hbm %s2, %s473
          %s476 = sshll.u32 %s466, 4
          %s477 = int_to_ptr.vmem [resolvable:$true] %s476
          %479 = dma.vmem_to_hbm [thread:$0]  %s477, 128, %s474, %s463
        $region48: #{tpu_custom_call.1} parent=27 // pred_fallthru
          _
      $region28: #{tpu_custom_call.1} parent=5 // pred_fallthru
        _
      %p480 = scmp.le.s32.totalorder 2, %s17
      // Predicated region
      $region49: #{tpu_custom_call.1} parent=5 // pred_check
        %p481 = pneg %p480
      $region50: #{tpu_custom_call.1} parent=5 // pred_check_branch
        %483 = sbr.rel (%p481) target = $region52
      $region51: #{tpu_custom_call.1} parent=5 // pred_region
        %s484 = ssub.s32 %s17, 2
        // Predicated region
        $region53: #{tpu_custom_call.1} parent=51 // pred_check
          %p485 = pneg %p110
        $region54: #{tpu_custom_call.1} parent=51 // pred_check_branch
          %487 = sbr.rel (%p485) target = $region56
        $region55: #{tpu_custom_call.1} parent=51 // pred_region
          %s488 = sand.u32 %s95, 1
          %s489 = scalar_lea.sflag [#allocation6], %s488
          %s490 = sand.u32 %s95, 1
          %s491 = smul.addr %s490, 8
          %s492 = scalar_lea.vmem [#allocation9], %s491
          %493 = dma.done %s489, 128
        $region56: #{tpu_custom_call.1} parent=51 // pred_fallthru
          _
      $region52: #{tpu_custom_call.1} parent=5 // pred_fallthru
        _
    $region6: #{tpu_custom_call.1} parent=1 // loop_footer
      %s21 = sadd.s32 1, %s17
    $region7: #{tpu_custom_call.1} parent=1 // loop_footer_branch
      %16 = sbr.rel target = $region3
    $region8: #{tpu_custom_call.1} parent=1 // loop_exit
      _
    %494 = vsyncpa [#allocation5], 1
    %s495 = scalar_lea.sflag [#allocation5], 1
    %496 = vsyncpa %s495, 1
    %497 = vsyncpa [#allocation8], 1
    %s498 = scalar_lea.sflag [#allocation8], 1
    %499 = vsyncpa %s498, 1
    %500 = vsyncpa [#allocation6], 1
    %s501 = scalar_lea.sflag [#allocation6], 1
    %502 = vsyncpa %s501, 1

</llo_original>
